<compile_context>
chip_gen: v6e
topology: v6e:2x2x1
jax: 0.10.0
libtpu: 0.0.40
codegen_flags: <defaults>
</compile_context>

<pallas_src>
import functools

import jax
import jax.numpy as jnp
from jax import lax
from jax.experimental import pallas as pl
from jax.experimental.pallas import tpu as pltpu


def _round_up(x, m):
    return (x + m - 1) // m * m


def _transition_up_kernel(xf_ref, w_ref, o_ref, *, cin, row_tile, wcp, k_pad, out_dtype):
    """One (batch, row-tile) step of the stride-2 transposed conv.

    xf_ref : (1, Cin, FP)       column-dilated, zero-padded input, spatial flattened row-major
                                with row stride WCP (FP = (MH_pad + 2) * WCP).
    w_ref  : (2*Co_pad, K_pad)  packed weights: rows [0, Co_pad) -> even output rows,
                                [Co_pad, 2*Co_pad) -> odd output rows; column 6*Cin = bias.
    o_ref  : (1, 2*Co_pad, LT)  LT = row_tile * WCP; lane (m_local*WCP + j) holds conv output
                                column j of phase-row (t*row_tile + m_local).
    """
    t = pl.program_id(1)
    lt = row_tile * wcp
    start = pl.multiple_of(t * lt, wcp)                      # 128-aligned row-tile start
    xs = xf_ref[0, :, pl.ds(start, (row_tile + 2) * wcp)]    # (Cin, (row_tile + 2) * WCP)

    # Shared im2col patch: 6 tap-shifted flat views (input rows m / m+1, lane shifts +2/+1/+0)
    # stacked on the contraction (sublane) axis, plus ones rows (bias + K padding).  The +1/+2
    # lane shifts lower to cheap XLU rotates; the WCP offsets stay vreg-aligned.
    offs = (wcp + 2, wcp + 1, wcp, 2, 1, 0)
    pieces = [xs[:, off:off + lt] for off in offs]
    pieces.append(jnp.ones((k_pad - 6 * cin, lt), dtype=xs.dtype))
    patch = jnp.concatenate(pieces, axis=0)                  # (K_pad, LT)

    # One MXU dot for both row parities, all taps and the bias; f32 accumulation.
    acc = jnp.dot(w_ref[...], patch, preferred_element_type=jnp.float32)   # (2*Co_pad, LT)
    o_ref[0] = acc.astype(out_dtype)


def transition_up(x, skip, w_pt, b, *, compute_dtype=None, row_tile=None):
    """x: (N, Cin, H, W), skip: (N, Cskip, Hs, Ws), w_pt: (Cin, Cout, 3, 3), b: (Cout,).

    Returns (N, Cout + Cskip, Hs, Ws), matching TransitionUp.forward (NCHW).
    """
    N, Cin, H, W = x.shape
    _, Cskip, Hs, Ws = skip.shape
    Cout = w_pt.shape[1]
    if compute_dtype is None:
        compute_dtype = x.dtype

    Hout, Wout = 2 * H + 1, 2 * W + 1
    MH = H + 1                                    # phase-row count (output row pairs 2m/2m+1)
    WCP = _round_up(2 * W + 3, 128)               # lane-padded output-column extent
    Co_pad = _round_up(Cout, 8)
    K_data = 6 * Cin + 1                          # 6 taps * Cin + bias column
    K_pad = _round_up(K_data, 8)

    if row_tile is None:                          # keep the output block a couple of MiB
        row_bytes = 2 * Co_pad * WCP * jnp.dtype(x.dtype).itemsize
        row_tile = int(max(1, min(MH, (2 * 1024 * 1024) // max(row_bytes, 1))))
    T = (MH + row_tile - 1) // row_tile
    MH_pad = T * row_tile
    HPr = MH_pad + 2                              # padded rows: 1 top halo + bottom zeros/guard
    FP = HPr * WCP
    LT = row_tile * WCP

    # Column-dilated, zero-padded input: x[ci, r, q] lives at xdp[ci, r + 1, 2q + 2]; every
    # other position (polyphase structural zeros, halos, lane padding) is exactly zero.
    xcol = jnp.stack([x, jnp.zeros_like(x)], axis=-1).reshape(N, Cin, H, 2 * W)
    xdp = jnp.pad(xcol, ((0, 0), (0, 0), (1, HPr - H - 1), (2, WCP - 2 * W - 2)))
    xdp = xdp.reshape(N, Cin, FP).astype(compute_dtype)

    # One packed weight operand: both row parities, all taps and the bias.
    def tap_w(kh, kw):
        return jnp.transpose(w_pt[:, :, kh, kw], (1, 0)).astype(jnp.float32)   # (Cout, Cin)

    zero_blk = jnp.zeros((Cout, Cin), jnp.float32)
    bias_col = b.reshape(Cout, 1).astype(jnp.float32)
    # tap order t = 0..5  <->  (input row m+1, lane +2/+1/+0), (input row m, lane +2/+1/+0)
    w_even = jnp.concatenate([tap_w(0, 0), tap_w(0, 1), tap_w(0, 2),
                              tap_w(2, 0), tap_w(2, 1), tap_w(2, 2), bias_col], axis=1)
    w_odd = jnp.concatenate([tap_w(1, 0), tap_w(1, 1), tap_w(1, 2),
                             zero_blk, zero_blk, zero_blk, bias_col], axis=1)

    def pad_wb(wm):
        return jnp.pad(wm, ((0, Co_pad - Cout), (0, K_pad - K_data)))

    w_all = jnp.concatenate([pad_wb(w_even), pad_wb(w_odd)], axis=0).astype(compute_dtype)

    kernel = functools.partial(
        _transition_up_kernel,
        cin=Cin, row_tile=row_tile, wcp=WCP, k_pad=K_pad, out_dtype=x.dtype)

    phases = pl.pallas_call(
        kernel,
        out_shape=jax.ShapeDtypeStruct((N, 2 * Co_pad, MH_pad * WCP), x.dtype),
        grid_spec=pltpu.PrefetchScalarGridSpec(
            num_scalar_prefetch=0,
            grid=(N, T),
            in_specs=[
                # Full (column-dilated) input per batch element: the block index is constant
                # along the row-tile axis, so it is DMA'd once per n and held in VMEM.
                pl.BlockSpec((1, Cin, FP), lambda n, t: (n, 0, 0)),
                pl.BlockSpec((2 * Co_pad, K_pad), lambda n, t: (0, 0)),
            ],
            out_specs=pl.BlockSpec((1, 2 * Co_pad, LT), lambda n, t: (n, 0, t)),
        ),
        compiler_params=pltpu.CompilerParams(
            dimension_semantics=("parallel", "parallel"),
        ),
    )(xdp, w_all)

    # Epilogue: row-parity interleave (contiguous WCP-sized chunks), center crop, channel concat.
    full = phases.reshape(N, 2, Co_pad, MH_pad, WCP)
    full = jnp.transpose(full, (0, 2, 3, 1, 4))              # (N, Co_pad, MH_pad, 2, WCP)
    full = full.reshape(N, Co_pad, 2 * MH_pad, WCP)          # row = 2*m + parity
    rh0 = (Hout - Hs) // 2
    rw0 = (Wout - Ws) // 2
    conv = full[:, :Cout, rh0:rh0 + Hs, rw0:rw0 + Ws]
    return jnp.concatenate([conv, skip.astype(conv.dtype)], axis=1)


def _reference(x, skip, w_pt, b):
    """Pure-JAX reference of TransitionUp.forward (NCHW, same as PyTorch)."""
    Cout = w_pt.shape[1]
    rhs = jnp.transpose(w_pt[:, :, ::-1, ::-1], (1, 0, 2, 3))   # OIHW
    out = lax.conv_general_dilated(
        x, rhs, window_strides=(1, 1), padding=((2, 2), (2, 2)),
        lhs_dilation=(2, 2), dimension_numbers=("NCHW", "OIHW", "NCHW"),
        precision=lax.Precision.HIGHEST)
    out = out + b.reshape(1, Cout, 1, 1)
    _, _, h, w = out.shape
    Hs, Ws = skip.shape[2], skip.shape[3]
    y0 = (h - Hs) // 2
    x0 = (w - Ws) // 2
    out = out[:, :, y0:y0 + Hs, x0:x0 + Ws]
    return jnp.concatenate([out, skip], axis=1)


if __name__ == "__main__":
    key = jax.random.PRNGKey(0)

    # case 1: square, odd crop offset; non-dividing row tile (MH=9, row_tile=4 -> 3 tiles).
    N, Cin, H, W = 2, 4, 8, 8
    Cout, Cskip, Hs, Ws = 4, 6, 15, 15
    k1, k2, k3, k4, key = jax.random.split(key, 5)
    w_pt = jax.random.normal(k1, (Cin, Cout, 3, 3), jnp.float32) * 0.1
    b = jax.random.normal(k2, (Cout,), jnp.float32) * 0.1
    x = jax.random.normal(k3, (N, Cin, H, W), jnp.float32)
    skip = jax.random.normal(k4, (N, Cskip, Hs, Ws), jnp.float32)

    out = jax.block_until_ready(transition_up(x, skip, w_pt, b, row_tile=4))
    ref = jax.block_until_ready(_reference(x, skip, w_pt, b))
    assert out.shape == (N, Cout + Cskip, Hs, Ws), out.shape
    assert jnp.allclose(out, ref, atol=1e-4, rtol=1e-4), float(jnp.max(jnp.abs(out - ref)))

    # case 2: non-square, mixed crop-offset parity, auto row tile (single tile path).
    N2, Cin2, H2, W2 = 2, 3, 5, 7
    Cout2, Cskip2, Hs2, Ws2 = 5, 2, 9, 11
    k1, k2, k3, k4, key = jax.random.split(key, 5)
    w_pt2 = jax.random.normal(k1, (Cin2, Cout2, 3, 3), jnp.float32) * 0.1
    b2 = jax.random.normal(k2, (Cout2,), jnp.float32) * 0.1
    x2 = jax.random.normal(k3, (N2, Cin2, H2, W2), jnp.float32)
    skip2 = jax.random.normal(k4, (N2, Cskip2, Hs2, Ws2), jnp.float32)

    out2 = jax.block_until_ready(transition_up(x2, skip2, w_pt2, b2))
    ref2 = jax.block_until_ready(_reference(x2, skip2, w_pt2, b2))
    assert out2.shape == (N2, Cout2 + Cskip2, Hs2, Ws2), out2.shape
    assert jnp.allclose(out2, ref2, atol=1e-4, rtol=1e-4), float(jnp.max(jnp.abs(out2 - ref2)))

    # case 3: bf16 operand cast (f32 MXU accumulation), looser tolerance.
    out3 = jax.block_until_ready(
        transition_up(x, skip, w_pt, b, compute_dtype=jnp.bfloat16, row_tile=3))
    assert out3.shape == ref.shape, out3.shape
    assert jnp.allclose(out3, ref, atol=1e-1, rtol=1e-1), float(jnp.max(jnp.abs(out3 - ref)))

    print("KERNEL_OK")
</pallas_src>

<mosaic_0001>
module attributes {stable_mosaic.version = 11 : i64} {
  func.func @_transition_up_kernel(%arg0: i32, %arg1: i32, %arg2: memref<1x4x1792xf32, #tpu.memory_space<vmem>>, %arg3: memref<16x32xf32, #tpu.memory_space<vmem>>, %arg4: memref<1x16x512xf32, #tpu.memory_space<vmem>>) attributes {dimension_semantics = [#tpu.dimension_semantics<parallel>, #tpu.dimension_semantics<parallel>], iteration_bounds = array<i64: 2, 3>, scalar_prefetch = 0 : i64, scratch_operands = 0 : i64, tpu.core_type = #tpu.core_type<tc>, window_params = [{transform_indices = @transform_0, window_bounds = array<i64: 1, 4, 1792>}, {pipeline_mode = #tpu.pipeline_mode<synchronous>, transform_indices = @transform_1, window_bounds = array<i64: 16, 32>}, {transform_indices = @transform_2, window_bounds = array<i64: 1, 16, 512>}]} {
    %c512_i32 = arith.constant 512 : i32
    %0 = arith.muli %arg1, %c512_i32 : i32
    %1 = tpu.assume_multiple %0, 128 : i32
    %c0 = arith.constant 0 : index
    %c0_0 = arith.constant 0 : index
    %2 = arith.index_cast %1 : i32 to index
    %3 = vector.load %arg2[%c0, %c0_0, %2] : memref<1x4x1792xf32, #tpu.memory_space<vmem>>, vector<1x4x768xf32>
    %4 = vector.shape_cast %3 : vector<1x4x768xf32> to vector<4x768xf32>
    %5 = vector.extract_strided_slice %4 {offsets = [0, 130], sizes = [4, 512], strides = [1, 1]} : vector<4x768xf32> to vector<4x512xf32>
    %6 = vector.extract_strided_slice %4 {offsets = [0, 129], sizes = [4, 512], strides = [1, 1]} : vector<4x768xf32> to vector<4x512xf32>
    %7 = vector.extract_strided_slice %4 {offsets = [0, 128], sizes = [4, 512], strides = [1, 1]} : vector<4x768xf32> to vector<4x512xf32>
    %8 = vector.extract_strided_slice %4 {offsets = [0, 2], sizes = [4, 512], strides = [1, 1]} : vector<4x768xf32> to vector<4x512xf32>
    %9 = vector.extract_strided_slice %4 {offsets = [0, 1], sizes = [4, 512], strides = [1, 1]} : vector<4x768xf32> to vector<4x512xf32>
    %10 = vector.extract_strided_slice %4 {offsets = [0, 0], sizes = [4, 512], strides = [1, 1]} : vector<4x768xf32> to vector<4x512xf32>
    %cst = arith.constant 1.000000e+00 : f32
    %11 = vector.broadcast %cst : f32 to vector<8x512xf32>
    %12 = tpu.concatenate %5, %6, %7, %8, %9, %10, %11 in 0 : vector<4x512xf32>, vector<4x512xf32>, vector<4x512xf32>, vector<4x512xf32>, vector<4x512xf32>, vector<4x512xf32>, vector<8x512xf32> -> vector<32x512xf32>
    %c0_1 = arith.constant 0 : index
    %c0_2 = arith.constant 0 : index
    %13 = vector.load %arg3[%c0_1, %c0_2] : memref<16x32xf32, #tpu.memory_space<vmem>>, vector<16x32xf32>
    %cst_3 = arith.constant dense<0.000000e+00> : vector<16x512xf32>
    %14 = tpu.matmul %13, %12, %cst_3 {dimension_numbers = #tpu.dot_dimension_numbers<[1], [0], [0], [1], [0, 0, 1, 1], [], []>} : vector<16x32xf32>, vector<32x512xf32>, vector<16x512xf32> -> vector<16x512xf32>
    %c0_4 = arith.constant 0 : index
    %c0_5 = arith.constant 0 : index
    %c0_6 = arith.constant 0 : index
    %15 = vector.load %arg4[%c0_4, %c0_5, %c0_6] : memref<1x16x512xf32, #tpu.memory_space<vmem>>, vector<1x16x512xf32>
    %16 = vector.shape_cast %15 : vector<1x16x512xf32> to vector<16x512xf32>
    %17 = vector.shape_cast %14 : vector<16x512xf32> to vector<1x16x512xf32>
    tpu.vector_store %arg4[%c0_4, %c0_5, %c0_6], %17 {strides = array<i32>} : memref<1x16x512xf32, #tpu.memory_space<vmem>>, vector<1x16x512xf32>,
    return
  }
  func.func @transform_0(%arg0: i32, %arg1: i32) -> (i32, i32, i32) {
    %c0_i32 = arith.constant 0 : i32
    %c0_i32_0 = arith.constant 0 : i32
    %c0_i32_1 = arith.constant 0 : i32
    return %arg0, %c0_i32, %c0_i32_0 : i32, i32, i32
  }
  func.func @transform_1(%arg0: i32, %arg1: i32) -> (i32, i32) {
    %c0_i32 = arith.constant 0 : i32
    %c0_i32_0 = arith.constant 0 : i32
    %c0_i32_1 = arith.constant 0 : i32
    return %c0_i32, %c0_i32_0 : i32, i32
  }
  func.func @transform_2(%arg0: i32, %arg1: i32) -> (i32, i32, i32) {
    %c0_i32 = arith.constant 0 : i32
    %c0_i32_0 = arith.constant 0 : i32
    return %arg0, %c0_i32, %arg1 : i32, i32, i32
  }
}

</mosaic_0001>

<llo_original>
// kernel: tpu_custom_call.1
$region0: #{tpu_custom_call.1}
  #allocation0 [shape = 'u32[]', space=smem, size = 0x4, offset = 0x4, fixed_abs, tag = 'smem constant byte address 0x4 - core index']
  #allocation1 [shape = 'u32[144,128]{1,0:T(1,128)}', space=vmem, size = 0x12000, scoped, tag = 'internal scratch']
  %s0 = inlined_call_operand.hbm [shape: f32[2,4,1792], index: 0, kind: input, shape index: {}]
  %s1 = inlined_call_operand.hbm [shape: f32[16,32], index: 1, kind: input, shape index: {}]
  %s2 = inlined_call_operand.hbm [shape: f32[2,16,1536], index: 2, kind: output, shape index: {}]
  %s3 = sld [smem:[#allocation0]]
  $region49: #{tpu_custom_call.1} parent=0
    _
  %s5 = ssub.s32 1, %s3
  %s6 = scalar_select 0, %s5, %s3
  $region1: #{tpu_custom_call.1} parent=0
    #allocation2 [shape = 'u8[57344]{0}', space=vmem, size = 0xe000, scoped, tag = 'input window, operand 0']
    #allocation3 [shape = 's32[2]{0}', space=sflag, size = 0x8, scoped, tag = 'scoped memory for tpu_custom_call.1']
    #allocation4 [shape = 's32[2]{0}', space=sflag, size = 0x8, scoped, tag = 'scoped memory for tpu_custom_call.1']
    #allocation5 [shape = 'u8[8192]{0}', space=vmem, size = 0x2000, scoped, tag = 'input window, operand 1, single buffered']
    #allocation6 [shape = 's32[1]{0}', space=sflag, size = 0x4, scoped, tag = 'scoped memory for tpu_custom_call.1']
    #allocation7 [shape = 'u8[65536]{0}', space=vmem, size = 0x10000, scoped, tag = 'output window, operand 0']
    %7 = vsyncpa [#allocation3], 0
    %s8 = scalar_lea.sflag [#allocation3], 1
    %9 = vsyncpa %s8, 0
    %10 = vsyncpa [#allocation6], 0
    %11 = vsyncpa [#allocation4], 0
    %s12 = scalar_lea.sflag [#allocation4], 1
    %13 = vsyncpa %s12, 0
    loop: start=0, step=1, limit=8
    $region2: #{tpu_custom_call.1} parent=1 // loop_pre_header
      _
    $region3: #{tpu_custom_call.1} parent=1 // loop_header
      %s15 = sphi 0, %s19
      %p16 = scmp.ge.s32.totalorder %s15, 8
      %s22 = sphi 0, %s34
      %s23 = sphi 0, %s30
      %s24 = sphi 0, %s22
      %s25 = sphi 0, %s23
      %s26 = sphi 0, %s24
      %s27 = sphi 0, %s25
      %s37 = sphi 0, %s39
      %s40 = sphi 0, %s37
      %s41 = sphi 0, %s40
      %s57 = sphi 0, %s41
      %s61 = sphi 0, %s61
      %s63 = sphi 0, %s61
      %s64 = sphi 0, %s63
      %s78 = sphi 0, %s64
      %s86 = sphi 0, %s88
      %s89 = sphi 0, %s86
      %s90 = sphi 0, %s89
      %s106 = sphi 0, %s90
    $region4: #{tpu_custom_call.1} parent=1 // loop_header_branch
      %18 = sbr.rel (%p16) target = $region8
    $region5: #{tpu_custom_call.1} parent=1 // loop_body
      %s20 = ssub.s32 %s15, 1
      %s21 = ssub.s32 %s15, 2
      %s28 = sadd.s32 1, %s23
      %p29 = scmp.ge.s32.totalorder %s28, 3
      %s30 = scalar_select %p29, 0, %s28
      %s31 = sadd.s32 1, %s22
      %s32 = scalar_select %p29, %s31, %s22
      %p33 = scmp.ge.s32.totalorder %s32, 2
      %s34 = scalar_select %p33, 0, %s32
      %s35 = ssub.s32 %s22, %s34
      %p36 = scmp.eq.s32.totalorder %s35, 0
      %s38 = sadd.s32 %s37, 1
      %s39 = scalar_select %p36, %s37, %s38
      %p42 = pneg %p36
      %p43 = scmp.eq.s32.totalorder %s15, 5
      %p44 = por %p42, %p43
      %p45 = scmp.ne.s32.totalorder %s37, %s40
      %p46 = scmp.eq.s32.totalorder %s15, 0
      %p47 = por %p45, %p46
      %p48 = scmp.ne.s32.totalorder %s37, %s40
      %p49 = scmp.eq.s32.totalorder %s20, 5
      %p50 = por %p48, %p49
      %p51 = scmp.ne.s32.totalorder %s40, %s41
      %p52 = scmp.eq.s32.totalorder %s20, 0
      %p53 = por %p51, %p52
      %p54 = scmp.ne.s32.totalorder %s40, %s41
      %p55 = scmp.eq.s32.totalorder %s21, 5
      %p56 = por %p54, %p55
      %p58 = scmp.ne.s32.totalorder %s41, %s57
      %p59 = scmp.eq.s32.totalorder %s21, 0
      %p60 = por %p58, %p59
      %s62 = sadd.s32 %s61, 1
      %p65 = scmp.eq.s32.totalorder %s15, 5
      %p66 = scmp.ne.s32.totalorder %s61, %s63
      %p67 = scmp.eq.s32.totalorder %s15, 0
      %p68 = por %p66, %p67
      %p69 = scmp.ne.s32.totalorder %s61, %s63
      %p70 = scmp.eq.s32.totalorder %s20, 5
      %p71 = por %p69, %p70
      %p72 = scmp.ne.s32.totalorder %s63, %s64
      %p73 = scmp.eq.s32.totalorder %s20, 0
      %p74 = por %p72, %p73
      %p75 = scmp.ne.s32.totalorder %s63, %s64
      %p76 = scmp.eq.s32.totalorder %s21, 5
      %p77 = por %p75, %p76
      %p79 = scmp.ne.s32.totalorder %s64, %s78
      %p80 = scmp.eq.s32.totalorder %s21, 0
      %p81 = por %p79, %p80
      %s82 = ssub.s32 %s22, %s34
      %s83 = ssub.s32 %s23, %s30
      %s84 = sor.u32 %s82, %s83
      %p85 = scmp.eq.s32.totalorder %s84, 0
      %s87 = sadd.s32 %s86, 1
      %s88 = scalar_select %p85, %s86, %s87
      %p91 = pneg %p85
      %p92 = scmp.eq.s32.totalorder %s15, 5
      %p93 = por %p91, %p92
      %p94 = scmp.ne.s32.totalorder %s86, %s89
      %p95 = scmp.eq.s32.totalorder %s15, 0
      %p96 = por %p94, %p95
      %p97 = scmp.ne.s32.totalorder %s86, %s89
      %p98 = scmp.eq.s32.totalorder %s20, 5
      %p99 = por %p97, %p98
      %p100 = scmp.ne.s32.totalorder %s89, %s90
      %p101 = scmp.eq.s32.totalorder %s20, 0
      %p102 = por %p100, %p101
      %p103 = scmp.ne.s32.totalorder %s89, %s90
      %p104 = scmp.eq.s32.totalorder %s21, 5
      %p105 = por %p103, %p104
      %p107 = scmp.ne.s32.totalorder %s90, %s106
      %p108 = scmp.eq.s32.totalorder %s21, 0
      %p109 = por %p107, %p108
      %p110 = scmp.le.s32.totalorder 1, %s15
      %p111 = scmp.lt.s32.totalorder %s15, 7
      %p112 = pnand %p110, %p111
      %p113 = pneg %p112
      // Predicated region
      $region9: #{tpu_custom_call.1} parent=5 // pred_check
        _
      $region10: #{tpu_custom_call.1} parent=5 // pred_check_branch
        %115 = sbr.rel (%p112) target = $region12
      $region11: #{tpu_custom_call.1} parent=5 // pred_region
        %s116 = ssub.s32 %s15, 1
        // Predicated region
        $region13: #{tpu_custom_call.1} parent=11 // pred_check
          %p117 = pneg %p74
        $region14: #{tpu_custom_call.1} parent=11 // pred_check_branch
          %119 = sbr.rel (%p117) target = $region16
        $region15: #{tpu_custom_call.1} parent=11 // pred_region
          %s121 = ssub.s32 256, 256
          %122 = vsyncadd [#allocation6], %s121
          %s123 = sshll.u32 [#allocation5], 4
          %s124 = int_to_ptr.vmem [resolvable:$true] %s123
          %129 = dma.hbm_to_vmem [thread:$0]  %s1, 256, %s124, [#allocation6], 128, 128, 8
        $region16: #{tpu_custom_call.1} parent=11 // pred_fallthru
          _
      $region12: #{tpu_custom_call.1} parent=5 // pred_fallthru
        _
      %p130 = scmp.lt.s32.totalorder %s15, 6
      // Predicated region
      $region17: #{tpu_custom_call.1} parent=5 // pred_check
        %p131 = pneg %p130
      $region18: #{tpu_custom_call.1} parent=5 // pred_check_branch
        %133 = sbr.rel (%p131) target = $region20
      $region19: #{tpu_custom_call.1} parent=5 // pred_region
        // Predicated region
        $region21: #{tpu_custom_call.1} parent=19 // pred_check
          %p134 = pneg %p47
        $region22: #{tpu_custom_call.1} parent=19 // pred_check_branch
          %136 = sbr.rel (%p134) target = $region24
        $region23: #{tpu_custom_call.1} parent=19 // pred_region
          %s137 = sand.u32 %s37, 1
          %s138 = scalar_lea.sflag [#allocation3], %s137
          %s139 = sand.u32 %s37, 1
          %s140 = smul.addr %s139, 56
          %s141 = scalar_lea.vmem [#allocation2], %s140
          %s143 = ssub.s32 896, 896
          %144 = vsyncadd %s138, %s143
          %s145 = smul.addr %s22, 14
          %s146 = smul.addr %s145, 64
          %s147 = scalar_lea.hbm %s0, %s146
          %s149 = sshll.u32 %s141, 4
          %s150 = int_to_ptr.vmem [resolvable:$true] %s149
          %152 = dma.hbm_to_vmem [thread:$0]  %s147, 896, %s150, %s138
        $region24: #{tpu_custom_call.1} parent=19 // pred_fallthru
          _
      $region20: #{tpu_custom_call.1} parent=5 // pred_fallthru
        _
      %p153 = scmp.le.s32.totalorder 1, %s15
      %p154 = scmp.lt.s32.totalorder %s15, 7
      %p155 = pnand %p153, %p154
      %p156 = pneg %p155
      // Predicated region
      $region25: #{tpu_custom_call.1} parent=5 // pred_check
        _
      $region26: #{tpu_custom_call.1} parent=5 // pred_check_branch
        %158 = sbr.rel (%p155) target = $region28
      $region27: #{tpu_custom_call.1} parent=5 // pred_region
        %s159 = ssub.s32 %s15, 1
        %s160 = sand.u32 %s40, 1
        %s161 = scalar_lea.sflag [#allocation3], %s160
        %s162 = sand.u32 %s40, 1
        %s163 = smul.addr %s162, 56
        %s164 = scalar_lea.vmem [#allocation2], %s163
        // Predicated region
        $region29: #{tpu_custom_call.1} parent=27 // pred_check
          %p165 = pneg %p53
        $region30: #{tpu_custom_call.1} parent=27 // pred_check_branch
          %167 = sbr.rel (%p165) target = $region32
        $region31: #{tpu_custom_call.1} parent=27 // pred_region
          %168 = dma.done %s161, 896
        $region32: #{tpu_custom_call.1} parent=27 // pred_fallthru
          _
        // Predicated region
        $region33: #{tpu_custom_call.1} parent=27 // pred_check
          %p169 = pneg %p74
        $region34: #{tpu_custom_call.1} parent=27 // pred_check_branch
          %171 = sbr.rel (%p169) target = $region36
        $region35: #{tpu_custom_call.1} parent=27 // pred_region
          %172 = dma.done [#allocation6], 256
        $region36: #{tpu_custom_call.1} parent=27 // pred_fallthru
          _
        %s173 = sand.u32 %s40, 1
        %s174 = scalar_lea.sflag [#allocation3], %s173
        %s175 = sand.u32 %s40, 1
        %s176 = smul.addr %s175, 56
        %s177 = scalar_lea.vmem [#allocation2], %s176
        %p178 = pneg %p53
        %p179 = pneg %p50
        %p180 = pneg %p74
        %p181 = pneg %p71
        %p182 = pneg %p102
        %p183 = pneg %p99
        %s184 = sand.u32 %s89, 1
        %s185 = scalar_lea.sflag [#allocation4], %s184
        %s186 = sand.u32 %s89, 1
        %s187 = smul.addr %s186, 64
        %s188 = scalar_lea.vmem [#allocation7], %s187
        %s189 = smul.u32 4, %s25
        %s190 = smul.u32 %s25, 512
        %s191 = sshra.s32 %s190, 7
        %s192 = sand.u32 %s190, 127
        %s193 = smul.addr %s191, 4
        %s194 = scalar_lea.vmem %s164, %s193 [#allocation2]
        %v195 = vld [vmem:[%s194] sm:$0xff]
        %v196 = vld [vmem:[%s194 + $0x8] sm:$0xff]
        %v197 = vld [vmem:[%s194 + $0x10] sm:$0xff]
        %v201 = vcombine.high %v195, %v195
        %v202 = vcombine.high %v196, %v196
        %v203 = vcombine.high %v197, %v197
        %204 = vrot.lane.b32.xlu0 %v201, 126
        %v205 = vpop.permute.xlu0 %204
        %206 = vrot.lane.b32.xlu0 %v196, 126
        %v207 = vpop.permute.xlu0 %206
        %208 = vrot.lane.b32.xlu0 %v202, 126
        %v209 = vpop.permute.xlu0 %208
        %210 = vrot.lane.b32.xlu0 %v197, 126
        %v211 = vpop.permute.xlu0 %210
        %212 = vrot.lane.b32.xlu0 %v203, 126
        %v213 = vpop.permute.xlu0 %212
        %vm214 = vcmask 1031168
        %v215 = vsel %vm214, %v205, %v207
        %v216 = vsel %vm214, %v207, %v209
        %v217 = vsel %vm214, %v209, %v211
        %v218 = vsel %vm214, %v211, %v213
        %v223 = vcombine.low %v196, %v196
        %v224 = vcombine.low %v197, %v197
        %225 = vrot.lane.b32.xlu0 %v195, 127
        %v226 = vpop.permute.xlu0 %225
        %227 = vrot.lane.b32.xlu0 %v223, 127
        %v228 = vpop.permute.xlu0 %227
        %229 = vrot.lane.b32.xlu0 %v196, 127
        %v230 = vpop.permute.xlu0 %229
        %231 = vrot.lane.b32.xlu0 %v224, 127
        %v232 = vpop.permute.xlu0 %231
        %233 = vrot.lane.b32.xlu0 %v197, 127
        %v234 = vpop.permute.xlu0 %233
        %vm235 = vcmask 1039360
        %v236 = vsel %vm235, %v226, %v228
        %v237 = vsel %vm235, %v228, %v230
        %v238 = vsel %vm235, %v230, %v232
        %v239 = vsel %vm235, %v232, %v234
        %v246 = vcombine.low %v195, %v195
        %247 = vrot.lane.b32.xlu0 %v246, 126
        %v248 = vpop.permute.xlu0 %247
        %249 = vrot.lane.b32.xlu0 %v195, 126
        %v250 = vpop.permute.xlu0 %249
        %251 = vrot.lane.b32.xlu0 %v223, 126
        %v252 = vpop.permute.xlu0 %251
        %253 = vrot.lane.b32.xlu0 %v224, 126
        %v254 = vpop.permute.xlu0 %253
        %v255 = vsel %vm214, %v248, %v250
        %v256 = vsel %vm214, %v250, %v252
        %v257 = vsel %vm214, %v252, %v207
        %v258 = vsel %vm214, %v207, %v254
        %263 = vrot.lane.b32.xlu0 %v201, 127
        %v264 = vpop.permute.xlu0 %263
        %265 = vrot.lane.b32.xlu0 %v202, 127
        %v266 = vpop.permute.xlu0 %265
        %v267 = vsel %vm235, %v226, %v264
        %v268 = vsel %vm235, %v264, %v230
        %v269 = vsel %vm235, %v230, %v266
        %v270 = vsel %vm235, %v266, %v234
        %vm277 = vcmask 1043456
        %v278 = vsel %vm277, %v215, %v236
        %v279 = vsel %vm277, %v216, %v237
        %v280 = vsel %vm277, %v217, %v238
        %v281 = vsel %vm277, %v218, %v239
        %v282 = vsel %vm277, %v201, %v255
        %v283 = vsel %vm277, %v196, %v256
        %v284 = vsel %vm277, %v202, %v257
        %v285 = vsel %vm277, %v197, %v258
        %v286 = vsel %vm277, %v267, %v246
        %v287 = vsel %vm277, %v268, %v195
        %v288 = vsel %vm277, %v269, %v223
        %v289 = vsel %vm277, %v270, %v196
        %v290 = vld [vmem:[#allocation5] sm:$0xff]
        %v291 = vld [vmem:[#allocation5 + $0x8] sm:$0xff]
        %vm292 = vcmask 261120
        %v294 = vsel %vm292, %v290, 0
        %v297 = vsel %vm292, %v291, 0
        %299 = vmatprep.subr.mxu0 0.0
        %300 = vmatpush1.msra.mxu0 0.0
        %301 = vmatprep.subr.mxu0 0.0
        %302 = vmatpush1.msra.mxu0 0.0
        %303 = vmatprep.subr.mxu0 0.0
        %304 = vmatpush1.msra.mxu0 0.0
        %305 = vmatprep.subr.mxu0 0.0
        %306 = vmatpush1.msra.mxu0 0.0
        %307 = vmatprep.subr.mxu0 0.0
        %308 = vmatpush1.msra.mxu0 0.0
        %309 = vmatprep.subr.mxu0 0.0
        %310 = vmatpush1.msra.mxu0 0.0
        %311 = vmatprep.subr.mxu0 0.0
        %312 = vmatpush1.msra.mxu0 0.0
        %313 = vmatprep.subr.mxu0 0.0
        %314 = vmatpush1.msra.mxu0 0.0
        %315 = vmatprep.subr.mxu0 0.0
        %316 = vmatpush1.msra.mxu0 0.0
        %317 = vmatprep.subr.mxu0 0.0
        %318 = vmatpush1.msra.mxu0 0.0
        %319 = vmatprep.subr.mxu0 0.0
        %320 = vmatpush1.msra.mxu0 0.0
        %321 = vmatprep.subr.mxu0 0.0
        %322 = vmatpush1.msra.mxu0 0.0
        %323 = vmatprep.subr.mxu0 1.0
        %324 = vmatpush1.msra.mxu0 1.0
        %325 = vmatprep.subr.mxu0 %v287
        %326 = vmatpush1.msra.mxu0 %v286
        %327 = vmatprep.subr.mxu0 %v283
        %328 = vmatpush1.msra.mxu0 %v282
        %329 = vmatprep.subr.mxu0 %v279
        %330 = vmatpush1.msra.mxu0 %v278
        %331 = vmatprep.subr.mxu0 0.0
        %332 = vmatpush2.msra.mxu0 0.0
        %333 = vmatprep.subr.mxu0 0.0
        %334 = vmatpush2.msra.mxu0 0.0
        %335 = vmatprep.subr.mxu0 0.0
        %336 = vmatpush2.msra.mxu0 0.0
        %337 = vmatprep.subr.mxu0 0.0
        %338 = vmatpush2.msra.mxu0 0.0
        %339 = vmatprep.subr.mxu0 0.0
        %340 = vmatpush2.msra.mxu0 0.0
        %341 = vmatprep.subr.mxu0 0.0
        %342 = vmatpush2.msra.mxu0 0.0
        %343 = vmatprep.subr.mxu0 0.0
        %344 = vmatpush2.msra.mxu0 0.0
        %345 = vmatprep.subr.mxu0 0.0
        %346 = vmatpush2.msra.mxu0 0.0
        %347 = vmatprep.subr.mxu0 0.0
        %348 = vmatpush2.msra.mxu0 0.0
        %349 = vmatprep.subr.mxu0 0.0
        %350 = vmatpush2.msra.mxu0 0.0
        %351 = vmatprep.subr.mxu0 0.0
        %352 = vmatpush2.msra.mxu0 0.0
        %353 = vmatprep.subr.mxu0 0.0
        %354 = vmatpush2.msra.mxu0 0.0
        %355 = vmatprep.subr.mxu0 0.0
        %356 = vmatpush2.msra.mxu0 0.0
        %357 = vmatprep.subr.mxu0 0.0
        %358 = vmatpush2.msra.mxu0 0.0
        %359 = vmatprep.subr.mxu0 0.0
        %360 = vmatpush2.msra.mxu0 0.0
        %361 = vmatprep.subr.mxu0 0.0
        %362 = vmatpush2.msra.mxu0 0.0
        %363 = vmatprep.mubr.f32.mxu0 0.0
        %364 = vmatmul.mubr.f32.gmra.mxu0 %v294
        %v365 = vpop.f32.mrf.mxu0
        %v366 = vadd.f32 0.0, %v365
        %v367 = vpop.f32.mrf.mxu0
        %v368 = vadd.f32 0.0, %v367
        %369 = vmatprep.mubr.f32.mxu0 0.0
        %370 = vmatmul.mubr.f32.gmra.mxu0 %v297
        %v371 = vpop.f32.mrf.mxu0
        %v372 = vadd.f32 0.0, %v371
        %v373 = vpop.f32.mrf.mxu0
        %v374 = vadd.f32 0.0, %v373
        %375 = vdwg.mxu0
        %376 = vmatprep.subr.mxu0 0.0
        %377 = vmatpush1.msra.mxu0 0.0
        %378 = vmatprep.subr.mxu0 0.0
        %379 = vmatpush1.msra.mxu0 0.0
        %380 = vmatprep.subr.mxu0 0.0
        %381 = vmatpush1.msra.mxu0 0.0
        %382 = vmatprep.subr.mxu0 0.0
        %383 = vmatpush1.msra.mxu0 0.0
        %384 = vmatprep.subr.mxu0 0.0
        %385 = vmatpush1.msra.mxu0 0.0
        %386 = vmatprep.subr.mxu0 0.0
        %387 = vmatpush1.msra.mxu0 0.0
        %388 = vmatprep.subr.mxu0 0.0
        %389 = vmatpush1.msra.mxu0 0.0
        %390 = vmatprep.subr.mxu0 0.0
        %391 = vmatpush1.msra.mxu0 0.0
        %392 = vmatprep.subr.mxu0 0.0
        %393 = vmatpush1.msra.mxu0 0.0
        %394 = vmatprep.subr.mxu0 0.0
        %395 = vmatpush1.msra.mxu0 0.0
        %396 = vmatprep.subr.mxu0 0.0
        %397 = vmatpush1.msra.mxu0 0.0
        %398 = vmatprep.subr.mxu0 0.0
        %399 = vmatpush1.msra.mxu0 0.0
        %400 = vmatprep.subr.mxu0 1.0
        %401 = vmatpush1.msra.mxu0 1.0
        %402 = vmatprep.subr.mxu0 %v289
        %403 = vmatpush1.msra.mxu0 %v288
        %404 = vmatprep.subr.mxu0 %v285
        %405 = vmatpush1.msra.mxu0 %v284
        %406 = vmatprep.subr.mxu0 %v281
        %407 = vmatpush1.msra.mxu0 %v280
        %408 = vmatprep.subr.mxu0 0.0
        %409 = vmatpush2.msra.mxu0 0.0
        %410 = vmatprep.subr.mxu0 0.0
        %411 = vmatpush2.msra.mxu0 0.0
        %412 = vmatprep.subr.mxu0 0.0
        %413 = vmatpush2.msra.mxu0 0.0
        %414 = vmatprep.subr.mxu0 0.0
        %415 = vmatpush2.msra.mxu0 0.0
        %416 = vmatprep.subr.mxu0 0.0
        %417 = vmatpush2.msra.mxu0 0.0
        %418 = vmatprep.subr.mxu0 0.0
        %419 = vmatpush2.msra.mxu0 0.0
        %420 = vmatprep.subr.mxu0 0.0
        %421 = vmatpush2.msra.mxu0 0.0
        %422 = vmatprep.subr.mxu0 0.0
        %423 = vmatpush2.msra.mxu0 0.0
        %424 = vmatprep.subr.mxu0 0.0
        %425 = vmatpush2.msra.mxu0 0.0
        %426 = vmatprep.subr.mxu0 0.0
        %427 = vmatpush2.msra.mxu0 0.0
        %428 = vmatprep.subr.mxu0 0.0
        %429 = vmatpush2.msra.mxu0 0.0
        %430 = vmatprep.subr.mxu0 0.0
        %431 = vmatpush2.msra.mxu0 0.0
        %432 = vmatprep.subr.mxu0 0.0
        %433 = vmatpush2.msra.mxu0 0.0
        %434 = vmatprep.subr.mxu0 0.0
        %435 = vmatpush2.msra.mxu0 0.0
        %436 = vmatprep.subr.mxu0 0.0
        %437 = vmatpush2.msra.mxu0 0.0
        %438 = vmatprep.subr.mxu0 0.0
        %439 = vmatpush2.msra.mxu0 0.0
        %440 = vmatprep.mubr.f32.mxu0 0.0
        %441 = vmatmul.mubr.f32.gmra.mxu0 %v294
        %v442 = vpop.f32.mrf.mxu0
        %v443 = vadd.f32 0.0, %v442
        %v444 = vpop.f32.mrf.mxu0
        %v445 = vadd.f32 0.0, %v444
        %446 = vmatprep.mubr.f32.mxu0 0.0
        %447 = vmatmul.mubr.f32.gmra.mxu0 %v297
        %v448 = vpop.f32.mrf.mxu0
        %v449 = vadd.f32 0.0, %v448
        %v450 = vpop.f32.mrf.mxu0
        %v451 = vadd.f32 0.0, %v450
        %452 = vdwg.mxu0
        %453 = vst [vmem:[%s188] sm:$0xff] %v366
        %454 = vst [vmem:[%s188 + $0x8] sm:$0xff] %v368
        %455 = vst [vmem:[%s188 + $0x10] sm:$0xff] %v443
        %456 = vst [vmem:[%s188 + $0x18] sm:$0xff] %v445
        %457 = vst [vmem:[%s188 + $0x20] sm:$0xff] %v372
        %458 = vst [vmem:[%s188 + $0x28] sm:$0xff] %v374
        %459 = vst [vmem:[%s188 + $0x30] sm:$0xff] %v449
        %460 = vst [vmem:[%s188 + $0x38] sm:$0xff] %v451
        %s461 = sand.u32 %s89, 1
        %s462 = scalar_lea.sflag [#allocation4], %s461
        %s463 = sand.u32 %s89, 1
        %s464 = smul.addr %s463, 64
        %s465 = scalar_lea.vmem [#allocation7], %s464
        // Predicated region
        $region37: #{tpu_custom_call.1} parent=27 // pred_check
          %p466 = pneg %p99
        $region38: #{tpu_custom_call.1} parent=27 // pred_check_branch
          %468 = sbr.rel (%p466) target = $region40
        $region39: #{tpu_custom_call.1} parent=27 // pred_region
          %s469 = smul.u32 4, %s25
          %s471 = ssub.s32 1024, 1024
          %472 = vsyncadd %s462, %s471
          %s473 = smul.addr %s24, 24
          %s474 = sadd.s32 %s469, %s473
          %s475 = smul.addr %s474, 128
          %s476 = scalar_lea.hbm %s2, %s475
          %s477 = sshll.u32 %s465, 4
          %s478 = int_to_ptr.vmem [resolvable:$true] %s477
          %483 = dma.vmem_to_hbm [thread:$0]  %s478, 1024, %s476, %s462, 512, 1536, 32
        $region40: #{tpu_custom_call.1} parent=27 // pred_fallthru
          _
      $region28: #{tpu_custom_call.1} parent=5 // pred_fallthru
        _
      %p484 = scmp.le.s32.totalorder 2, %s15
      // Predicated region
      $region41: #{tpu_custom_call.1} parent=5 // pred_check
        %p485 = pneg %p484
      $region42: #{tpu_custom_call.1} parent=5 // pred_check_branch
        %487 = sbr.rel (%p485) target = $region44
      $region43: #{tpu_custom_call.1} parent=5 // pred_region
        %s488 = ssub.s32 %s15, 2
        // Predicated region
        $region45: #{tpu_custom_call.1} parent=43 // pred_check
          %p489 = pneg %p105
        $region46: #{tpu_custom_call.1} parent=43 // pred_check_branch
          %491 = sbr.rel (%p489) target = $region48
        $region47: #{tpu_custom_call.1} parent=43 // pred_region
          %s492 = sand.u32 %s90, 1
          %s493 = scalar_lea.sflag [#allocation4], %s492
          %s494 = sand.u32 %s90, 1
          %s495 = smul.addr %s494, 64
          %s496 = scalar_lea.vmem [#allocation7], %s495
          %497 = dma.done %s493, 1024
        $region48: #{tpu_custom_call.1} parent=43 // pred_fallthru
          _
      $region44: #{tpu_custom_call.1} parent=5 // pred_fallthru
        _
    $region6: #{tpu_custom_call.1} parent=1 // loop_footer
      %s19 = sadd.s32 1, %s15
    $region7: #{tpu_custom_call.1} parent=1 // loop_footer_branch
      %14 = sbr.rel target = $region3
    $region8: #{tpu_custom_call.1} parent=1 // loop_exit
      _
    %498 = vsyncpa [#allocation3], 1
    %s499 = scalar_lea.sflag [#allocation3], 1
    %500 = vsyncpa %s499, 1
    %501 = vsyncpa [#allocation6], 1
    %502 = vsyncpa [#allocation4], 1
    %s503 = scalar_lea.sflag [#allocation4], 1
    %504 = vsyncpa %s503, 1

</llo_original>
